<compile_context>
chip_gen: v7x
topology: tpu7x:2x2x1
jax: 0.10.0
libtpu: 0.0.40
codegen_flags: <defaults>
</compile_context>

<pallas_src>
import math
import jax
import jax.numpy as jnp
from jax import lax
from jax.experimental import pallas as pl
from jax.experimental.pallas import tpu as pltpu


def _fused_sdpa_kernel(n_heads, T, F):
    """One grid step = `n_heads` (b,h) slabs, fully resident in VMEM."""

    def kernel(x_ref, w_ref, b_ref, o_ref):
        # x_ref: (1, n_heads*T, D); w_ref: (D, 3F) (Wq pre-scaled); b_ref: (1, 3F)
        x = x_ref[0]                                               # (n_heads*T, D)

        # Single fused QKV projection: one MXU push instead of three.
        qkv = jnp.dot(x, w_ref[...], preferred_element_type=jnp.float32) + b_ref[...]
        qkv = qkv.reshape(n_heads, T, 3 * F)                       # leading-dim split

        q = qkv[:, :, 0:F]            # scale_factor already folded into Wq/bq
        k = qkv[:, :, F:2 * F]
        v = qkv[:, :, 2 * F:3 * F]

        # Batched q @ k^T without explicit transpose (contract last dims, batch 0).
        s = lax.dot_general(q, k, (((2,), (2,)), ((0,), (0,))),
                            preferred_element_type=jnp.float32)    # (n_heads, T, T)

        # Numerically-stable softmax over the last axis.
        s = s - jnp.max(s, axis=-1, keepdims=True)
        e = jnp.exp(s)
        p = e * pl.reciprocal(jnp.sum(e, axis=-1, keepdims=True), approx=True)

        # TODO(synk): dropout applied as inference-mode identity here.

        o = lax.dot_general(p, v, (((2,), (1,)), ((0,), (0,))),
                            preferred_element_type=jnp.float32)    # (n_heads, T, F)

        # Lane-dense store: heads concatenated along lanes -> (T, n_heads*F),
        # a full multiple-of-128 last dim -> unmasked vector stores.
        wide = jnp.concatenate([o[j] for j in range(n_heads)], axis=-1)
        o_ref[0] = wide.astype(o_ref.dtype)

    return kernel


def sdpa_pallas(sequence, wq, bq, wk, bk, wv, bv, scale_factor):
    """sequence: (B, H, T, seq_len); w*: (seq_len, ff_dim); b*: (ff_dim,)."""
    B, H, T, D = sequence.shape
    F = wq.shape[1]
    BH = B * H

    # Two grid steps so a v7x chip can use both TensorCores; on v5e/v6e this is
    # still only 2 steps of pipeline overhead instead of BH.
    G = 2 if BH % 2 == 0 else 1
    n_heads = BH // G

    # Fold scale_factor into the Q projection; fuse weights and biases.
    sf = jnp.float32(scale_factor)
    w_qkv = jnp.concatenate([wq * sf, wk, wv], axis=1)                   # (D, 3F)
    b_qkv = jnp.concatenate([bq * sf, bk, bv], axis=0).reshape(1, 3 * F)  # (1, 3F)

    x = sequence.reshape(G, n_heads * T, D)

    out = pl.pallas_call(
        _fused_sdpa_kernel(n_heads, T, F),
        out_shape=jax.ShapeDtypeStruct((G, T, n_heads * F), sequence.dtype),
        grid_spec=pltpu.PrefetchScalarGridSpec(
            num_scalar_prefetch=0,
            grid=(G,),
            in_specs=[
                pl.BlockSpec((1, n_heads * T, D), lambda i: (i, 0, 0)),  # x slab
                pl.BlockSpec((D, 3 * F), lambda i: (0, 0)),              # fused W (resident)
                pl.BlockSpec((1, 3 * F), lambda i: (0, 0)),              # fused bias
            ],
            out_specs=pl.BlockSpec((1, T, n_heads * F), lambda i: (i, 0, 0)),
        ),
        compiler_params=pltpu.CompilerParams(
            dimension_semantics=("parallel",),
            vmem_limit_bytes=32 * 1024 * 1024,
        ),
    )(x, w_qkv, b_qkv)

    # out[g, t, j*F + f] == head (g*n_heads + j), query t, feature f.
    out = out.reshape(G, T, n_heads, F).transpose(0, 2, 1, 3)  # (G, n_heads, T, F)
    return out.reshape(B, H, T, F)


def sdpa_reference(sequence, wq, bq, wk, bk, wv, bv, scale_factor):
    q = sequence @ wq + bq
    k = sequence @ wk + bk
    v = sequence @ wv + bv
    s = jnp.einsum("bhqd,bhkd->bhqk", q, k) * scale_factor
    p = jax.nn.softmax(s, axis=-1)
    return jnp.einsum("bhqk,bhkd->bhqd", p, v)


if __name__ == "__main__":
    # Small shapes consistent with the module's forward pass.
    B, H, T = 2, 4, 8
    seq_len = 16   # Linear in_features
    ff_dim = 32    # Linear out_features
    scale_factor = 1.0 / math.sqrt(ff_dim)

    key = jax.random.PRNGKey(0)
    kx, kq, kbq, kk, kbk, kv, kbv = jax.random.split(key, 7)

    # Deterministic PyTorch-Linear-style init: U(-1/sqrt(in), 1/sqrt(in)).
    bound = 1.0 / math.sqrt(seq_len)
    wq = jax.random.uniform(kq, (seq_len, ff_dim), jnp.float32, -bound, bound)
    bq = jax.random.uniform(kbq, (ff_dim,), jnp.float32, -bound, bound)
    wk = jax.random.uniform(kk, (seq_len, ff_dim), jnp.float32, -bound, bound)
    bk = jax.random.uniform(kbk, (ff_dim,), jnp.float32, -bound, bound)
    wv = jax.random.uniform(kv, (seq_len, ff_dim), jnp.float32, -bound, bound)
    bv = jax.random.uniform(kbv, (ff_dim,), jnp.float32, -bound, bound)

    x = jax.random.normal(kx, (B, H, T, seq_len), jnp.float32)

    out = sdpa_pallas(x, wq, bq, wk, bk, wv, bv, scale_factor)
    out = jax.block_until_ready(out)

    ref = sdpa_reference(x, wq, bq, wk, bk, wv, bv, scale_factor)
    assert out.shape == (B, H, T, ff_dim), out.shape
    # Tolerance relaxed vs. 1e-5 because of pl.reciprocal(approx=True) (EUP path).
    assert jnp.allclose(out, ref, atol=5e-3, rtol=5e-3), float(jnp.max(jnp.abs(out - ref)))

    print("KERNEL_OK")
</pallas_src>

<mosaic_0001>
module attributes {stable_mosaic.version = 11 : i64} {
  func.func @kernel(%arg0: i32, %arg1: memref<1x32x16xf32, #tpu.memory_space<vmem>>, %arg2: memref<16x96xf32, #tpu.memory_space<vmem>>, %arg3: memref<1x96xf32, #tpu.memory_space<vmem>>, %arg4: memref<1x8x128xf32, #tpu.memory_space<vmem>>) attributes {dimension_semantics = [#tpu.dimension_semantics<parallel>], iteration_bounds = array<i64: 2>, scalar_prefetch = 0 : i64, scratch_operands = 0 : i64, tpu.core_type = #tpu.core_type<tc>, window_params = [{transform_indices = @transform_0, window_bounds = array<i64: 1, 32, 16>}, {pipeline_mode = #tpu.pipeline_mode<synchronous>, transform_indices = @transform_1, window_bounds = array<i64: 16, 96>}, {pipeline_mode = #tpu.pipeline_mode<synchronous>, transform_indices = @transform_2, window_bounds = array<i64: 1, 96>}, {transform_indices = @transform_3, window_bounds = array<i64: 1, 8, 128>}]} {
    %c0 = arith.constant 0 : index
    %c0_0 = arith.constant 0 : index
    %c0_1 = arith.constant 0 : index
    %0 = vector.load %arg1[%c0, %c0_0, %c0_1] : memref<1x32x16xf32, #tpu.memory_space<vmem>>, vector<1x32x16xf32>
    %1 = vector.shape_cast %0 : vector<1x32x16xf32> to vector<32x16xf32>
    %c0_2 = arith.constant 0 : index
    %c0_3 = arith.constant 0 : index
    %2 = vector.load %arg2[%c0_2, %c0_3] : memref<16x96xf32, #tpu.memory_space<vmem>>, vector<16x96xf32>
    %cst = arith.constant dense<0.000000e+00> : vector<32x96xf32>
    %3 = tpu.matmul %1, %2, %cst {dimension_numbers = #tpu.dot_dimension_numbers<[1], [0], [0], [1], [0, 0, 1, 1], [], []>} : vector<32x16xf32>, vector<16x96xf32>, vector<32x96xf32> -> vector<32x96xf32>
    %c0_4 = arith.constant 0 : index
    %c0_5 = arith.constant 0 : index
    %4 = vector.load %arg3[%c0_4, %c0_5] : memref<1x96xf32, #tpu.memory_space<vmem>>, vector<1x96xf32>
    %5 = vector.broadcast %4 : vector<1x96xf32> to vector<32x96xf32>
    %6 = arith.addf %3, %5 : vector<32x96xf32>
    %7 = vector.shape_cast %6 : vector<32x96xf32> to vector<4x8x96xf32>
    %8 = vector.extract_strided_slice %7 {offsets = [0, 0, 0], sizes = [4, 8, 32], strides = [1, 1, 1]} : vector<4x8x96xf32> to vector<4x8x32xf32>
    %9 = vector.extract_strided_slice %7 {offsets = [0, 0, 32], sizes = [4, 8, 32], strides = [1, 1, 1]} : vector<4x8x96xf32> to vector<4x8x32xf32>
    %10 = vector.extract_strided_slice %7 {offsets = [0, 0, 64], sizes = [4, 8, 32], strides = [1, 1, 1]} : vector<4x8x96xf32> to vector<4x8x32xf32>
    %cst_6 = arith.constant dense<0.000000e+00> : vector<4x8x8xf32>
    %11 = tpu.matmul %8, %9, %cst_6 {dimension_numbers = #tpu.dot_dimension_numbers<[2], [2], [1], [1], [0, 0, 0, 1, 1, 1], [0], [0]>} : vector<4x8x32xf32>, vector<4x8x32xf32>, vector<4x8x8xf32> -> vector<4x8x8xf32>
    %cst_7 = arith.constant dense<0xFF800000> : vector<4x8xf32>
    %12 = vector.multi_reduction <maximumf>, %11, %cst_7 [2] : vector<4x8x8xf32> to vector<4x8xf32>
    %13 = vector.shape_cast %12 : vector<4x8xf32> to vector<4x8x1xf32>
    %14 = vector.broadcast %13 : vector<4x8x1xf32> to vector<4x8x8xf32>
    %15 = arith.subf %11, %14 : vector<4x8x8xf32>
    %16 = math.exp %15 : vector<4x8x8xf32>
    %cst_8 = arith.constant dense<0.000000e+00> : vector<4x8xf32>
    %17 = vector.multi_reduction <add>, %16, %cst_8 [2] : vector<4x8x8xf32> to vector<4x8xf32>
    %18 = vector.shape_cast %17 : vector<4x8xf32> to vector<4x8x1xf32>
    %19 = tpu.reciprocal %18 {approx = true} : vector<4x8x1xf32> -> vector<4x8x1xf32>
    %20 = vector.broadcast %19 : vector<4x8x1xf32> to vector<4x8x8xf32>
    %21 = arith.mulf %16, %20 : vector<4x8x8xf32>
    %cst_9 = arith.constant dense<0.000000e+00> : vector<4x8x32xf32>
    %22 = tpu.matmul %21, %10, %cst_9 {dimension_numbers = #tpu.dot_dimension_numbers<[2], [1], [1], [2], [0, 0, 0, 1, 1, 2], [0], [0]>} : vector<4x8x8xf32>, vector<4x8x32xf32>, vector<4x8x32xf32> -> vector<4x8x32xf32>
    %23 = vector.extract_strided_slice %22 {offsets = [0, 0, 0], sizes = [1, 8, 32], strides = [1, 1, 1]} : vector<4x8x32xf32> to vector<1x8x32xf32>
    %24 = vector.shape_cast %23 : vector<1x8x32xf32> to vector<8x32xf32>
    %25 = vector.extract_strided_slice %22 {offsets = [1, 0, 0], sizes = [1, 8, 32], strides = [1, 1, 1]} : vector<4x8x32xf32> to vector<1x8x32xf32>
    %26 = vector.shape_cast %25 : vector<1x8x32xf32> to vector<8x32xf32>
    %27 = vector.extract_strided_slice %22 {offsets = [2, 0, 0], sizes = [1, 8, 32], strides = [1, 1, 1]} : vector<4x8x32xf32> to vector<1x8x32xf32>
    %28 = vector.shape_cast %27 : vector<1x8x32xf32> to vector<8x32xf32>
    %29 = vector.extract_strided_slice %22 {offsets = [3, 0, 0], sizes = [1, 8, 32], strides = [1, 1, 1]} : vector<4x8x32xf32> to vector<1x8x32xf32>
    %30 = vector.shape_cast %29 : vector<1x8x32xf32> to vector<8x32xf32>
    %31 = tpu.concatenate %24, %26, %28, %30 in 1 : vector<8x32xf32>, vector<8x32xf32>, vector<8x32xf32>, vector<8x32xf32> -> vector<8x128xf32>
    %c0_10 = arith.constant 0 : index
    %c0_11 = arith.constant 0 : index
    %c0_12 = arith.constant 0 : index
    %32 = vector.load %arg4[%c0_10, %c0_11, %c0_12] : memref<1x8x128xf32, #tpu.memory_space<vmem>>, vector<1x8x128xf32>
    %33 = vector.shape_cast %32 : vector<1x8x128xf32> to vector<8x128xf32>
    %34 = vector.shape_cast %31 : vector<8x128xf32> to vector<1x8x128xf32>
    tpu.vector_store %arg4[%c0_10, %c0_11, %c0_12], %34 {strides = array<i32>} : memref<1x8x128xf32, #tpu.memory_space<vmem>>, vector<1x8x128xf32>,
    return
  }
  func.func @transform_0(%arg0: i32) -> (i32, i32, i32) {
    %c0_i32 = arith.constant 0 : i32
    %c0_i32_0 = arith.constant 0 : i32
    %c0_i32_1 = arith.constant 0 : i32
    return %arg0, %c0_i32, %c0_i32_0 : i32, i32, i32
  }
  func.func @transform_1(%arg0: i32) -> (i32, i32) {
    %c0_i32 = arith.constant 0 : i32
    %c0_i32_0 = arith.constant 0 : i32
    %c0_i32_1 = arith.constant 0 : i32
    return %c0_i32, %c0_i32_0 : i32, i32
  }
  func.func @transform_2(%arg0: i32) -> (i32, i32) {
    %c0_i32 = arith.constant 0 : i32
    %c0_i32_0 = arith.constant 0 : i32
    %c0_i32_1 = arith.constant 0 : i32
    return %c0_i32, %c0_i32_0 : i32, i32
  }
  func.func @transform_3(%arg0: i32) -> (i32, i32, i32) {
    %c0_i32 = arith.constant 0 : i32
    %c0_i32_0 = arith.constant 0 : i32
    %c0_i32_1 = arith.constant 0 : i32
    return %arg0, %c0_i32, %c0_i32_0 : i32, i32, i32
  }
}

</mosaic_0001>

<llo_original>
// kernel: tpu_custom_call.1
$region0: #{tpu_custom_call.1}
  #allocation0 [shape = 'u32[]', space=smem, size = 0x4, offset = 0x4, fixed_abs, tag = 'smem constant byte address 0x4 - core index']
  #allocation1 [shape = 'u32[144,128]{1,0:T(1,128)}', space=vmem, size = 0x12000, scoped, tag = 'internal scratch']
  %s0 = inlined_call_operand.vmem [shape: f32[2,32,16], index: 0, kind: input, shape index: {}]
  %s1 = inlined_call_operand.vmem [shape: f32[16,96], index: 1, kind: input, shape index: {}]
  %s2 = inlined_call_operand.vmem [shape: f32[1,96], index: 2, kind: input, shape index: {}]
  %s3 = inlined_call_operand.hbm [shape: f32[2,8,128], index: 3, kind: output, shape index: {}]
  %s4 = sld [smem:[#allocation0]]
  $region45: #{tpu_custom_call.1} parent=0
    _
  %s6 = ssub.s32 1, %s4
  %s7 = scalar_select 0, %s6, %s4
  $region1: #{tpu_custom_call.1} parent=0
    #allocation2 [shape = 'u8[8192]{0}', space=vmem, size = 0x2000, scoped, tag = 'output window, operand 0']
    #allocation3 [shape = 's32[2]{0}', space=sflag, size = 0x8, scoped, tag = 'scoped memory for tpu_custom_call.1']
    %8 = vsyncpa [#allocation3], 0
    %s9 = scalar_lea.sflag [#allocation3], 1
    %10 = vsyncpa %s9, 0
    loop: start=0, step=1, limit=4
    $region2: #{tpu_custom_call.1} parent=1 // loop_pre_header
      _
    $region3: #{tpu_custom_call.1} parent=1 // loop_header
      %s12 = sphi 0, %s16
      %p13 = scmp.ge.s32.totalorder %s12, 4
      %s22 = sphi 0, %s24
      %s25 = sphi 0, %s22
      %s26 = sphi 0, %s25
      %s42 = sphi 0, %s26
      %s46 = sphi 0, %s46
      %s48 = sphi 0, %s46
      %s49 = sphi 0, %s48
      %s63 = sphi 0, %s49
      %s67 = sphi 0, %s67
      %s69 = sphi 0, %s67
      %s70 = sphi 0, %s69
      %s84 = sphi 0, %s70
      %s90 = sphi 0, %s92
      %s93 = sphi 0, %s90
      %s94 = sphi 0, %s93
      %s110 = sphi 0, %s94
    $region4: #{tpu_custom_call.1} parent=1 // loop_header_branch
      %15 = sbr.rel (%p13) target = $region8
    $region5: #{tpu_custom_call.1} parent=1 // loop_body
      %s17 = ssub.s32 %s12, 1
      %s18 = ssub.s32 %s12, 2
      %s19 = sadd.s32 %s12, 1
      %s20 = ssub.s32 %s12, %s19
      %p21 = scmp.eq.s32.totalorder %s20, 0
      %s23 = sadd.s32 %s22, 1
      %s24 = scalar_select %p21, %s22, %s23
      %p27 = pneg %p21
      %p28 = scmp.eq.s32.totalorder %s12, 1
      %p29 = por %p27, %p28
      %p30 = scmp.ne.s32.totalorder %s22, %s25
      %p31 = scmp.eq.s32.totalorder %s12, 0
      %p32 = por %p30, %p31
      %p33 = scmp.ne.s32.totalorder %s22, %s25
      %p34 = scmp.eq.s32.totalorder %s17, 1
      %p35 = por %p33, %p34
      %p36 = scmp.ne.s32.totalorder %s25, %s26
      %p37 = scmp.eq.s32.totalorder %s17, 0
      %p38 = por %p36, %p37
      %p39 = scmp.ne.s32.totalorder %s25, %s26
      %p40 = scmp.eq.s32.totalorder %s18, 1
      %p41 = por %p39, %p40
      %p43 = scmp.ne.s32.totalorder %s26, %s42
      %p44 = scmp.eq.s32.totalorder %s18, 0
      %p45 = por %p43, %p44
      %s47 = sadd.s32 %s46, 1
      %p50 = scmp.eq.s32.totalorder %s12, 1
      %p51 = scmp.ne.s32.totalorder %s46, %s48
      %p52 = scmp.eq.s32.totalorder %s12, 0
      %p53 = por %p51, %p52
      %p54 = scmp.ne.s32.totalorder %s46, %s48
      %p55 = scmp.eq.s32.totalorder %s17, 1
      %p56 = por %p54, %p55
      %p57 = scmp.ne.s32.totalorder %s48, %s49
      %p58 = scmp.eq.s32.totalorder %s17, 0
      %p59 = por %p57, %p58
      %p60 = scmp.ne.s32.totalorder %s48, %s49
      %p61 = scmp.eq.s32.totalorder %s18, 1
      %p62 = por %p60, %p61
      %p64 = scmp.ne.s32.totalorder %s49, %s63
      %p65 = scmp.eq.s32.totalorder %s18, 0
      %p66 = por %p64, %p65
      %s68 = sadd.s32 %s67, 1
      %p71 = scmp.eq.s32.totalorder %s12, 1
      %p72 = scmp.ne.s32.totalorder %s67, %s69
      %p73 = scmp.eq.s32.totalorder %s12, 0
      %p74 = por %p72, %p73
      %p75 = scmp.ne.s32.totalorder %s67, %s69
      %p76 = scmp.eq.s32.totalorder %s17, 1
      %p77 = por %p75, %p76
      %p78 = scmp.ne.s32.totalorder %s69, %s70
      %p79 = scmp.eq.s32.totalorder %s17, 0
      %p80 = por %p78, %p79
      %p81 = scmp.ne.s32.totalorder %s69, %s70
      %p82 = scmp.eq.s32.totalorder %s18, 1
      %p83 = por %p81, %p82
      %p85 = scmp.ne.s32.totalorder %s70, %s84
      %p86 = scmp.eq.s32.totalorder %s18, 0
      %p87 = por %p85, %p86
      %s88 = ssub.s32 %s12, %s19
      %p89 = scmp.eq.s32.totalorder %s88, 0
      %s91 = sadd.s32 %s90, 1
      %s92 = scalar_select %p89, %s90, %s91
      %p95 = pneg %p89
      %p96 = scmp.eq.s32.totalorder %s12, 1
      %p97 = por %p95, %p96
      %p98 = scmp.ne.s32.totalorder %s90, %s93
      %p99 = scmp.eq.s32.totalorder %s12, 0
      %p100 = por %p98, %p99
      %p101 = scmp.ne.s32.totalorder %s90, %s93
      %p102 = scmp.eq.s32.totalorder %s17, 1
      %p103 = por %p101, %p102
      %p104 = scmp.ne.s32.totalorder %s93, %s94
      %p105 = scmp.eq.s32.totalorder %s17, 0
      %p106 = por %p104, %p105
      %p107 = scmp.ne.s32.totalorder %s93, %s94
      %p108 = scmp.eq.s32.totalorder %s18, 1
      %p109 = por %p107, %p108
      %p111 = scmp.ne.s32.totalorder %s94, %s110
      %p112 = scmp.eq.s32.totalorder %s18, 0
      %p113 = por %p111, %p112
      %p114 = scmp.le.s32.totalorder 1, %s12
      %p115 = scmp.lt.s32.totalorder %s12, 3
      %p116 = pnand %p114, %p115
      %p117 = pneg %p116
      // Predicated region
      $region9: #{tpu_custom_call.1} parent=5 // pred_check
        _
      $region10: #{tpu_custom_call.1} parent=5 // pred_check_branch
        %119 = sbr.rel (%p116) target = $region12
      $region11: #{tpu_custom_call.1} parent=5 // pred_region
        %s120 = ssub.s32 %s12, 1
        // Predicated region
        $region13: #{tpu_custom_call.1} parent=11 // pred_check
          %p121 = pneg %p59
        $region14: #{tpu_custom_call.1} parent=11 // pred_check_branch
          %123 = sbr.rel (%p121) target = $region16
        $region15: #{tpu_custom_call.1} parent=11 // pred_region
          _
        $region16: #{tpu_custom_call.1} parent=11 // pred_fallthru
          _
        // Predicated region
        $region17: #{tpu_custom_call.1} parent=11 // pred_check
          %p124 = pneg %p80
        $region18: #{tpu_custom_call.1} parent=11 // pred_check_branch
          %126 = sbr.rel (%p124) target = $region20
        $region19: #{tpu_custom_call.1} parent=11 // pred_region
          _
        $region20: #{tpu_custom_call.1} parent=11 // pred_fallthru
          _
      $region12: #{tpu_custom_call.1} parent=5 // pred_fallthru
        _
      %p127 = scmp.lt.s32.totalorder %s12, 2
      // Predicated region
      $region21: #{tpu_custom_call.1} parent=5 // pred_check
        %p128 = pneg %p127
      $region22: #{tpu_custom_call.1} parent=5 // pred_check_branch
        %130 = sbr.rel (%p128) target = $region24
      $region23: #{tpu_custom_call.1} parent=5 // pred_region
        // Predicated region
        $region25: #{tpu_custom_call.1} parent=23 // pred_check
          %p131 = pneg %p32
        $region26: #{tpu_custom_call.1} parent=23 // pred_check_branch
          %133 = sbr.rel (%p131) target = $region28
        $region27: #{tpu_custom_call.1} parent=23 // pred_region
          %p134 = scmp.lt.s32.totalorder %s12, 1
          %s135 = scalar_select %p134, %s12, 1
          %s136 = smul.addr %s135, 4
          %s137 = smul.addr %s136, 8
          %s138 = scalar_lea.vmem %s0, %s137
        $region28: #{tpu_custom_call.1} parent=23 // pred_fallthru
          _
      $region24: #{tpu_custom_call.1} parent=5 // pred_fallthru
        _
      %p139 = scmp.le.s32.totalorder 1, %s12
      %p140 = scmp.lt.s32.totalorder %s12, 3
      %p141 = pnand %p139, %p140
      %p142 = pneg %p141
      // Predicated region
      $region29: #{tpu_custom_call.1} parent=5 // pred_check
        _
      $region30: #{tpu_custom_call.1} parent=5 // pred_check_branch
        %144 = sbr.rel (%p141) target = $region32
      $region31: #{tpu_custom_call.1} parent=5 // pred_region
        %s145 = ssub.s32 %s12, 1
        %p146 = scmp.lt.s32.totalorder %s17, 1
        %s147 = scalar_select %p146, %s17, 1
        %s148 = smul.addr %s147, 4
        %s149 = smul.addr %s148, 8
        %s150 = scalar_lea.vmem %s0, %s149
        %p151 = pneg %p38
        %p152 = pneg %p35
        %p153 = pneg %p59
        %p154 = pneg %p56
        %p155 = pneg %p80
        %p156 = pneg %p77
        %p157 = pneg %p106
        %p158 = pneg %p103
        %s159 = sand.u32 %s93, 1
        %s160 = scalar_lea.sflag [#allocation3], %s159
        %s161 = sand.u32 %s93, 1
        %s162 = smul.addr %s161, 8
        %s163 = scalar_lea.vmem [#allocation2], %s162
        %p164 = scmp.lt.s32.totalorder %s17, 1
        %s165 = scalar_select %p164, %s17, 1
        %s166 = smul.addr %s165, 4
        %s167 = smul.addr %s166, 8
        %s168 = scalar_lea.vmem %s0, %s167
        %v169 = vld [vmem:[%s168] sm:$0xff]
        %v170 = vld [vmem:[%s168 + $0x8] sm:$0xff]
        %v171 = vld [vmem:[%s168 + $0x10] sm:$0xff]
        %v172 = vld [vmem:[%s168 + $0x18] sm:$0xff]
        %v173 = vld [vmem:[%s1] sm:$0xff]
        %v174 = vld [vmem:[%s1 + $0x8] sm:$0xff]
        %v175 = vld [vmem:[%s2] sm:$0x1]
        %v177 = vlaneseq
        %v178 = vshrl.u32 %v177, 7
        %v179 = vsub.s32 0, %v178
        %v180 = vrot.slane %v175, %v179
        %vm182 = vcmask 130048
        %v184 = vsel %vm182, %v169, 0
        %v187 = vsel %vm182, %v170, 0
        %v190 = vsel %vm182, %v171, 0
        %v193 = vsel %vm182, %v172, 0
        %195 = vmatprep.subr.mxu0 0.0
        %196 = vmatpush1.msra.mxu0 %v173
        %197 = vmatprep.subr.mxu0 0.0
        %198 = vmatpush1.msra.mxu0 %v174
        %199 = vmatprep.subr.mxu0 0.0
        %200 = vmatpush1.msra.mxu0 0.0
        %201 = vmatprep.subr.mxu0 0.0
        %202 = vmatpush1.msra.mxu0 0.0
        %203 = vmatprep.subr.mxu0 0.0
        %204 = vmatpush1.msra.mxu0 0.0
        %205 = vmatprep.subr.mxu0 0.0
        %206 = vmatpush1.msra.mxu0 0.0
        %207 = vmatprep.subr.mxu0 0.0
        %208 = vmatpush1.msra.mxu0 0.0
        %209 = vmatprep.subr.mxu0 0.0
        %210 = vmatpush1.msra.mxu0 0.0
        %211 = vmatprep.subr.mxu0 0.0
        %212 = vmatpush1.msra.mxu0 0.0
        %213 = vmatprep.subr.mxu0 0.0
        %214 = vmatpush1.msra.mxu0 0.0
        %215 = vmatprep.subr.mxu0 0.0
        %216 = vmatpush1.msra.mxu0 0.0
        %217 = vmatprep.subr.mxu0 0.0
        %218 = vmatpush1.msra.mxu0 0.0
        %219 = vmatprep.subr.mxu0 0.0
        %220 = vmatpush1.msra.mxu0 0.0
        %221 = vmatprep.subr.mxu0 0.0
        %222 = vmatpush1.msra.mxu0 0.0
        %223 = vmatprep.subr.mxu0 0.0
        %224 = vmatpush1.msra.mxu0 0.0
        %225 = vmatprep.subr.mxu0 0.0
        %226 = vmatpush1.msra.mxu0 0.0
        %227 = vmatprep.subr.mxu0 0.0
        %228 = vmatpush1.msra.mxu0 0.0
        %229 = vmatprep.subr.mxu0 0.0
        %230 = vmatpush1.msra.mxu0 0.0
        %231 = vmatprep.subr.mxu0 0.0
        %232 = vmatpush1.msra.mxu0 0.0
        %233 = vmatprep.subr.mxu0 0.0
        %234 = vmatpush1.msra.mxu0 0.0
        %235 = vmatprep.subr.mxu0 0.0
        %236 = vmatpush1.msra.mxu0 0.0
        %237 = vmatprep.subr.mxu0 0.0
        %238 = vmatpush1.msra.mxu0 0.0
        %239 = vmatprep.subr.mxu0 0.0
        %240 = vmatpush1.msra.mxu0 0.0
        %241 = vmatprep.subr.mxu0 0.0
        %242 = vmatpush1.msra.mxu0 0.0
        %243 = vmatprep.subr.mxu0 0.0
        %244 = vmatpush1.msra.mxu0 0.0
        %245 = vmatprep.subr.mxu0 0.0
        %246 = vmatpush1.msra.mxu0 0.0
        %247 = vmatprep.subr.mxu0 0.0
        %248 = vmatpush1.msra.mxu0 0.0
        %249 = vmatprep.subr.mxu0 0.0
        %250 = vmatpush1.msra.mxu0 0.0
        %251 = vmatprep.subr.mxu0 0.0
        %252 = vmatpush1.msra.mxu0 0.0
        %253 = vmatprep.subr.mxu0 0.0
        %254 = vmatpush1.msra.mxu0 0.0
        %255 = vmatprep.subr.mxu0 0.0
        %256 = vmatpush1.msra.mxu0 0.0
        %257 = vmatprep.subr.mxu0 0.0
        %258 = vmatpush1.msra.mxu0 0.0
        %259 = vmatprep.mubr.f32.mxu0 0.0
        %260 = vmatmul.mubr.f32.gmra.mrb[0].mxu0 %v184
        %v261 = vpop.f32.mrb[0].mxu0
        %v262 = vadd.f32 %v180, %v261
        %v263 = vpop.f32.mrb[0].mxu0
        %264 = vmatprep.mubr.f32.mxu0 0.0
        %265 = vmatmul.mubr.f32.gmra.mrb[0].mxu0 %v187
        %v266 = vpop.f32.mrb[0].mxu0
        %v267 = vadd.f32 %v180, %v266
        %v268 = vpop.f32.mrb[0].mxu0
        %269 = vmatprep.mubr.f32.mxu0 0.0
        %270 = vmatmul.mubr.f32.gmra.mrb[0].mxu0 %v190
        %v271 = vpop.f32.mrb[0].mxu0
        %v272 = vadd.f32 %v180, %v271
        %v273 = vpop.f32.mrb[0].mxu0
        %274 = vmatprep.mubr.f32.mxu0 0.0
        %275 = vmatmul.mubr.f32.gmra.mrb[0].mxu0 %v193
        %v276 = vpop.f32.mrb[0].mxu0
        %v277 = vadd.f32 %v180, %v276
        %v278 = vpop.f32.mrb[0].mxu0
        %279 = vdwg.mxu0
        %281 = vrot.lane.b32.xlu0 %v262, 96
        %v282 = vpop.permute.xlu0 %281
        %vm283 = vcmask 261120
        %v284 = vsel %vm283, %v262, 0
        %v286 = vsel %vm283, %v282, 0
        %288 = vmatprep.subr.mxu0 0.0
        %289 = vmatpush1.xpose.msra.mxu0 %v286
        %290 = vmatprep.subr.mxu0 0.0
        %291 = vmatpush1.xpose.msra.mxu0 0.0
        %292 = vmatprep.subr.mxu0 0.0
        %293 = vmatpush1.xpose.msra.mxu0 0.0
        %294 = vmatprep.subr.mxu0 0.0
        %295 = vmatpush1.xpose.msra.mxu0 0.0
        %296 = vmatprep.subr.mxu0 0.0
        %297 = vmatpush1.xpose.msra.mxu0 0.0
        %298 = vmatprep.subr.mxu0 0.0
        %299 = vmatpush1.xpose.msra.mxu0 0.0
        %300 = vmatprep.subr.mxu0 0.0
        %301 = vmatpush1.xpose.msra.mxu0 0.0
        %302 = vmatprep.subr.mxu0 0.0
        %303 = vmatpush1.xpose.msra.mxu0 0.0
        %304 = vmatprep.subr.mxu0 0.0
        %305 = vmatpush1.xpose.msra.mxu0 0.0
        %306 = vmatprep.subr.mxu0 0.0
        %307 = vmatpush1.xpose.msra.mxu0 0.0
        %308 = vmatprep.subr.mxu0 0.0
        %309 = vmatpush1.xpose.msra.mxu0 0.0
        %310 = vmatprep.subr.mxu0 0.0
        %311 = vmatpush1.xpose.msra.mxu0 0.0
        %312 = vmatprep.subr.mxu0 0.0
        %313 = vmatpush1.xpose.msra.mxu0 0.0
        %314 = vmatprep.subr.mxu0 0.0
        %315 = vmatpush1.xpose.msra.mxu0 0.0
        %316 = vmatprep.subr.mxu0 0.0
        %317 = vmatpush1.xpose.msra.mxu0 0.0
        %318 = vmatprep.subr.mxu0 0.0
        %319 = vmatpush1.xpose.msra.mxu0 0.0
        %320 = vmatprep.subr.mxu0 0.0
        %321 = vmatpush1.xpose.msra.mxu0 0.0
        %322 = vmatprep.subr.mxu0 0.0
        %323 = vmatpush1.xpose.msra.mxu0 0.0
        %324 = vmatprep.subr.mxu0 0.0
        %325 = vmatpush1.xpose.msra.mxu0 0.0
        %326 = vmatprep.subr.mxu0 0.0
        %327 = vmatpush1.xpose.msra.mxu0 0.0
        %328 = vmatprep.subr.mxu0 0.0
        %329 = vmatpush1.xpose.msra.mxu0 0.0
        %330 = vmatprep.subr.mxu0 0.0
        %331 = vmatpush1.xpose.msra.mxu0 0.0
        %332 = vmatprep.subr.mxu0 0.0
        %333 = vmatpush1.xpose.msra.mxu0 0.0
        %334 = vmatprep.subr.mxu0 0.0
        %335 = vmatpush1.xpose.msra.mxu0 0.0
        %336 = vmatprep.subr.mxu0 0.0
        %337 = vmatpush1.xpose.msra.mxu0 0.0
        %338 = vmatprep.subr.mxu0 0.0
        %339 = vmatpush1.xpose.msra.mxu0 0.0
        %340 = vmatprep.subr.mxu0 0.0
        %341 = vmatpush1.xpose.msra.mxu0 0.0
        %342 = vmatprep.subr.mxu0 0.0
        %343 = vmatpush1.xpose.msra.mxu0 0.0
        %344 = vmatprep.subr.mxu0 0.0
        %345 = vmatpush1.xpose.msra.mxu0 0.0
        %346 = vmatprep.subr.mxu0 0.0
        %347 = vmatpush1.xpose.msra.mxu0 0.0
        %348 = vmatprep.subr.mxu0 0.0
        %349 = vmatpush1.xpose.msra.mxu0 0.0
        %350 = vmatprep.subr.mxu0 0.0
        %351 = vmatpush1.xpose.msra.mxu0 0.0
        %352 = vmatprep.mubr.f32.mxu0 0.0
        %353 = vmatmul.mubr.f32.gmra.mrb[0].mxu0 %v284
        %v354 = vpop.f32.mrb[0].mxu0
        %v355 = vadd.f32 0.0, %v354
        %v356 = vpop.f32.mrb[0].mxu0
        %357 = vdwg.mxu0
        %359 = vrot.lane.b32.xlu0 %v267, 96
        %v360 = vpop.permute.xlu0 %359
        %v361 = vsel %vm283, %v267, 0
        %v363 = vsel %vm283, %v360, 0
        %365 = vmatprep.subr.mxu0 0.0
        %366 = vmatpush1.xpose.msra.mxu0 %v363
        %367 = vmatprep.subr.mxu0 0.0
        %368 = vmatpush1.xpose.msra.mxu0 0.0
        %369 = vmatprep.subr.mxu0 0.0
        %370 = vmatpush1.xpose.msra.mxu0 0.0
        %371 = vmatprep.subr.mxu0 0.0
        %372 = vmatpush1.xpose.msra.mxu0 0.0
        %373 = vmatprep.subr.mxu0 0.0
        %374 = vmatpush1.xpose.msra.mxu0 0.0
        %375 = vmatprep.subr.mxu0 0.0
        %376 = vmatpush1.xpose.msra.mxu0 0.0
        %377 = vmatprep.subr.mxu0 0.0
        %378 = vmatpush1.xpose.msra.mxu0 0.0
        %379 = vmatprep.subr.mxu0 0.0
        %380 = vmatpush1.xpose.msra.mxu0 0.0
        %381 = vmatprep.subr.mxu0 0.0
        %382 = vmatpush1.xpose.msra.mxu0 0.0
        %383 = vmatprep.subr.mxu0 0.0
        %384 = vmatpush1.xpose.msra.mxu0 0.0
        %385 = vmatprep.subr.mxu0 0.0
        %386 = vmatpush1.xpose.msra.mxu0 0.0
        %387 = vmatprep.subr.mxu0 0.0
        %388 = vmatpush1.xpose.msra.mxu0 0.0
        %389 = vmatprep.subr.mxu0 0.0
        %390 = vmatpush1.xpose.msra.mxu0 0.0
        %391 = vmatprep.subr.mxu0 0.0
        %392 = vmatpush1.xpose.msra.mxu0 0.0
        %393 = vmatprep.subr.mxu0 0.0
        %394 = vmatpush1.xpose.msra.mxu0 0.0
        %395 = vmatprep.subr.mxu0 0.0
        %396 = vmatpush1.xpose.msra.mxu0 0.0
        %397 = vmatprep.subr.mxu0 0.0
        %398 = vmatpush1.xpose.msra.mxu0 0.0
        %399 = vmatprep.subr.mxu0 0.0
        %400 = vmatpush1.xpose.msra.mxu0 0.0
        %401 = vmatprep.subr.mxu0 0.0
        %402 = vmatpush1.xpose.msra.mxu0 0.0
        %403 = vmatprep.subr.mxu0 0.0
        %404 = vmatpush1.xpose.msra.mxu0 0.0
        %405 = vmatprep.subr.mxu0 0.0
        %406 = vmatpush1.xpose.msra.mxu0 0.0
        %407 = vmatprep.subr.mxu0 0.0
        %408 = vmatpush1.xpose.msra.mxu0 0.0
        %409 = vmatprep.subr.mxu0 0.0
        %410 = vmatpush1.xpose.msra.mxu0 0.0
        %411 = vmatprep.subr.mxu0 0.0
        %412 = vmatpush1.xpose.msra.mxu0 0.0
        %413 = vmatprep.subr.mxu0 0.0
        %414 = vmatpush1.xpose.msra.mxu0 0.0
        %415 = vmatprep.subr.mxu0 0.0
        %416 = vmatpush1.xpose.msra.mxu0 0.0
        %417 = vmatprep.subr.mxu0 0.0
        %418 = vmatpush1.xpose.msra.mxu0 0.0
        %419 = vmatprep.subr.mxu0 0.0
        %420 = vmatpush1.xpose.msra.mxu0 0.0
        %421 = vmatprep.subr.mxu0 0.0
        %422 = vmatpush1.xpose.msra.mxu0 0.0
        %423 = vmatprep.subr.mxu0 0.0
        %424 = vmatpush1.xpose.msra.mxu0 0.0
        %425 = vmatprep.subr.mxu0 0.0
        %426 = vmatpush1.xpose.msra.mxu0 0.0
        %427 = vmatprep.subr.mxu0 0.0
        %428 = vmatpush1.xpose.msra.mxu0 0.0
        %429 = vmatprep.mubr.f32.mxu0 0.0
        %430 = vmatmul.mubr.f32.gmra.mrb[0].mxu0 %v361
        %v431 = vpop.f32.mrb[0].mxu0
        %v432 = vadd.f32 0.0, %v431
        %v433 = vpop.f32.mrb[0].mxu0
        %434 = vdwg.mxu0
        %436 = vrot.lane.b32.xlu0 %v272, 96
        %v437 = vpop.permute.xlu0 %436
        %v438 = vsel %vm283, %v272, 0
        %v440 = vsel %vm283, %v437, 0
        %442 = vmatprep.subr.mxu0 0.0
        %443 = vmatpush1.xpose.msra.mxu0 %v440
        %444 = vmatprep.subr.mxu0 0.0
        %445 = vmatpush1.xpose.msra.mxu0 0.0
        %446 = vmatprep.subr.mxu0 0.0
        %447 = vmatpush1.xpose.msra.mxu0 0.0
        %448 = vmatprep.subr.mxu0 0.0
        %449 = vmatpush1.xpose.msra.mxu0 0.0
        %450 = vmatprep.subr.mxu0 0.0
        %451 = vmatpush1.xpose.msra.mxu0 0.0
        %452 = vmatprep.subr.mxu0 0.0
        %453 = vmatpush1.xpose.msra.mxu0 0.0
        %454 = vmatprep.subr.mxu0 0.0
        %455 = vmatpush1.xpose.msra.mxu0 0.0
        %456 = vmatprep.subr.mxu0 0.0
        %457 = vmatpush1.xpose.msra.mxu0 0.0
        %458 = vmatprep.subr.mxu0 0.0
        %459 = vmatpush1.xpose.msra.mxu0 0.0
        %460 = vmatprep.subr.mxu0 0.0
        %461 = vmatpush1.xpose.msra.mxu0 0.0
        %462 = vmatprep.subr.mxu0 0.0
        %463 = vmatpush1.xpose.msra.mxu0 0.0
        %464 = vmatprep.subr.mxu0 0.0
        %465 = vmatpush1.xpose.msra.mxu0 0.0
        %466 = vmatprep.subr.mxu0 0.0
        %467 = vmatpush1.xpose.msra.mxu0 0.0
        %468 = vmatprep.subr.mxu0 0.0
        %469 = vmatpush1.xpose.msra.mxu0 0.0
        %470 = vmatprep.subr.mxu0 0.0
        %471 = vmatpush1.xpose.msra.mxu0 0.0
        %472 = vmatprep.subr.mxu0 0.0
        %473 = vmatpush1.xpose.msra.mxu0 0.0
        %474 = vmatprep.subr.mxu0 0.0
        %475 = vmatpush1.xpose.msra.mxu0 0.0
        %476 = vmatprep.subr.mxu0 0.0
        %477 = vmatpush1.xpose.msra.mxu0 0.0
        %478 = vmatprep.subr.mxu0 0.0
        %479 = vmatpush1.xpose.msra.mxu0 0.0
        %480 = vmatprep.subr.mxu0 0.0
        %481 = vmatpush1.xpose.msra.mxu0 0.0
        %482 = vmatprep.subr.mxu0 0.0
        %483 = vmatpush1.xpose.msra.mxu0 0.0
        %484 = vmatprep.subr.mxu0 0.0
        %485 = vmatpush1.xpose.msra.mxu0 0.0
        %486 = vmatprep.subr.mxu0 0.0
        %487 = vmatpush1.xpose.msra.mxu0 0.0
        %488 = vmatprep.subr.mxu0 0.0
        %489 = vmatpush1.xpose.msra.mxu0 0.0
        %490 = vmatprep.subr.mxu0 0.0
        %491 = vmatpush1.xpose.msra.mxu0 0.0
        %492 = vmatprep.subr.mxu0 0.0
        %493 = vmatpush1.xpose.msra.mxu0 0.0
        %494 = vmatprep.subr.mxu0 0.0
        %495 = vmatpush1.xpose.msra.mxu0 0.0
        %496 = vmatprep.subr.mxu0 0.0
        %497 = vmatpush1.xpose.msra.mxu0 0.0
        %498 = vmatprep.subr.mxu0 0.0
        %499 = vmatpush1.xpose.msra.mxu0 0.0
        %500 = vmatprep.subr.mxu0 0.0
        %501 = vmatpush1.xpose.msra.mxu0 0.0
        %502 = vmatprep.subr.mxu0 0.0
        %503 = vmatpush1.xpose.msra.mxu0 0.0
        %504 = vmatprep.subr.mxu0 0.0
        %505 = vmatpush1.xpose.msra.mxu0 0.0
        %506 = vmatprep.mubr.f32.mxu0 0.0
        %507 = vmatmul.mubr.f32.gmra.mrb[0].mxu0 %v438
        %v508 = vpop.f32.mrb[0].mxu0
        %v509 = vadd.f32 0.0, %v508
        %v510 = vpop.f32.mrb[0].mxu0
        %511 = vdwg.mxu0
        %513 = vrot.lane.b32.xlu0 %v277, 96
        %v514 = vpop.permute.xlu0 %513
        %v515 = vsel %vm283, %v277, 0
        %v517 = vsel %vm283, %v514, 0
        %519 = vmatprep.subr.mxu0 0.0
        %520 = vmatpush1.xpose.msra.mxu0 %v517
        %521 = vmatprep.subr.mxu0 0.0
        %522 = vmatpush1.xpose.msra.mxu0 0.0
        %523 = vmatprep.subr.mxu0 0.0
        %524 = vmatpush1.xpose.msra.mxu0 0.0
        %525 = vmatprep.subr.mxu0 0.0
        %526 = vmatpush1.xpose.msra.mxu0 0.0
        %527 = vmatprep.subr.mxu0 0.0
        %528 = vmatpush1.xpose.msra.mxu0 0.0
        %529 = vmatprep.subr.mxu0 0.0
        %530 = vmatpush1.xpose.msra.mxu0 0.0
        %531 = vmatprep.subr.mxu0 0.0
        %532 = vmatpush1.xpose.msra.mxu0 0.0
        %533 = vmatprep.subr.mxu0 0.0
        %534 = vmatpush1.xpose.msra.mxu0 0.0
        %535 = vmatprep.subr.mxu0 0.0
        %536 = vmatpush1.xpose.msra.mxu0 0.0
        %537 = vmatprep.subr.mxu0 0.0
        %538 = vmatpush1.xpose.msra.mxu0 0.0
        %539 = vmatprep.subr.mxu0 0.0
        %540 = vmatpush1.xpose.msra.mxu0 0.0
        %541 = vmatprep.subr.mxu0 0.0
        %542 = vmatpush1.xpose.msra.mxu0 0.0
        %543 = vmatprep.subr.mxu0 0.0
        %544 = vmatpush1.xpose.msra.mxu0 0.0
        %545 = vmatprep.subr.mxu0 0.0
        %546 = vmatpush1.xpose.msra.mxu0 0.0
        %547 = vmatprep.subr.mxu0 0.0
        %548 = vmatpush1.xpose.msra.mxu0 0.0
        %549 = vmatprep.subr.mxu0 0.0
        %550 = vmatpush1.xpose.msra.mxu0 0.0
        %551 = vmatprep.subr.mxu0 0.0
        %552 = vmatpush1.xpose.msra.mxu0 0.0
        %553 = vmatprep.subr.mxu0 0.0
        %554 = vmatpush1.xpose.msra.mxu0 0.0
        %555 = vmatprep.subr.mxu0 0.0
        %556 = vmatpush1.xpose.msra.mxu0 0.0
        %557 = vmatprep.subr.mxu0 0.0
        %558 = vmatpush1.xpose.msra.mxu0 0.0
        %559 = vmatprep.subr.mxu0 0.0
        %560 = vmatpush1.xpose.msra.mxu0 0.0
        %561 = vmatprep.subr.mxu0 0.0
        %562 = vmatpush1.xpose.msra.mxu0 0.0
        %563 = vmatprep.subr.mxu0 0.0
        %564 = vmatpush1.xpose.msra.mxu0 0.0
        %565 = vmatprep.subr.mxu0 0.0
        %566 = vmatpush1.xpose.msra.mxu0 0.0
        %567 = vmatprep.subr.mxu0 0.0
        %568 = vmatpush1.xpose.msra.mxu0 0.0
        %569 = vmatprep.subr.mxu0 0.0
        %570 = vmatpush1.xpose.msra.mxu0 0.0
        %571 = vmatprep.subr.mxu0 0.0
        %572 = vmatpush1.xpose.msra.mxu0 0.0
        %573 = vmatprep.subr.mxu0 0.0
        %574 = vmatpush1.xpose.msra.mxu0 0.0
        %575 = vmatprep.subr.mxu0 0.0
        %576 = vmatpush1.xpose.msra.mxu0 0.0
        %577 = vmatprep.subr.mxu0 0.0
        %578 = vmatpush1.xpose.msra.mxu0 0.0
        %579 = vmatprep.subr.mxu0 0.0
        %580 = vmatpush1.xpose.msra.mxu0 0.0
        %581 = vmatprep.subr.mxu0 0.0
        %582 = vmatpush1.xpose.msra.mxu0 0.0
        %583 = vmatprep.mubr.f32.mxu0 0.0
        %584 = vmatmul.mubr.f32.gmra.mrb[0].mxu0 %v515
        %v585 = vpop.f32.mrb[0].mxu0
        %v586 = vadd.f32 0.0, %v585
        %v587 = vpop.f32.mrb[0].mxu0
        %588 = vdwg.mxu0
        %vm589 = vcmask 64512
        %v590 = vsel %vm589, %v355, -inf
        %591 = vmax.xlane.f32.xlu0 %v590
        %v592 = vpop.xlane.xlu0 %591
        %v593 = vsel %vm589, %v432, -inf
        %594 = vmax.xlane.f32.xlu0 %v593
        %v595 = vpop.xlane.xlu0 %594
        %v596 = vsel %vm589, %v509, -inf
        %597 = vmax.xlane.f32.xlu0 %v596
        %v598 = vpop.xlane.xlu0 %597
        %v599 = vsel %vm589, %v586, -inf
        %600 = vmax.xlane.f32.xlu0 %v599
        %v601 = vpop.xlane.xlu0 %600
        %v602 = vsub.f32 %v355, %v592
        %v603 = vsub.f32 %v432, %v595
        %v604 = vsub.f32 %v509, %v598
        %v605 = vsub.f32 %v586, %v601
        %v606 = vmul.f32 %v602, 1.442695
        %v607 = vpow.pop %v606
        %v608 = vmul.f32 %v603, 1.442695
        %v609 = vpow.pop %v608
        %v610 = vmul.f32 %v604, 1.442695
        %v611 = vpow.pop %v610
        %v612 = vmul.f32 %v605, 1.442695
        %v613 = vpow.pop %v612
        %v614 = vsel %vm589, %v607, 0.0
        %615 = vadd.xlane.f32.xlu0 %v614
        %v616 = vpop.xlane.xlu0 %615
        %v617 = vsel %vm589, %v609, 0.0
        %618 = vadd.xlane.f32.xlu0 %v617
        %v619 = vpop.xlane.xlu0 %618
        %v620 = vsel %vm589, %v611, 0.0
        %621 = vadd.xlane.f32.xlu0 %v620
        %v622 = vpop.xlane.xlu0 %621
        %v623 = vsel %vm589, %v613, 0.0
        %624 = vadd.xlane.f32.xlu0 %v623
        %v625 = vpop.xlane.xlu0 %624
        %v626 = vrcp.pop %v616
        %v627 = vrcp.pop %v619
        %v628 = vrcp.pop %v622
        %v629 = vrcp.pop %v625
        %v630 = vmul.f32 %v607, %v626
        %v631 = vmul.f32 %v609, %v627
        %v632 = vmul.f32 %v611, %v628
        %v633 = vmul.f32 %v613, %v629
        %634 = vrot.lane.b32.xlu0 %v262, 64
        %v635 = vpop.permute.xlu0 %634
        %v638 = vsel %vm589, %v630, 0
        %640 = vmatprep.subr.mxu0 0.0
        %641 = vmatpush1.msra.mxu0 %v635
        %642 = vmatprep.subr.mxu0 0.0
        %643 = vmatpush1.msra.mxu0 0.0
        %644 = vmatprep.subr.mxu0 0.0
        %645 = vmatpush1.msra.mxu0 0.0
        %646 = vmatprep.subr.mxu0 0.0
        %647 = vmatpush1.msra.mxu0 0.0
        %648 = vmatprep.subr.mxu0 0.0
        %649 = vmatpush1.msra.mxu0 0.0
        %650 = vmatprep.subr.mxu0 0.0
        %651 = vmatpush1.msra.mxu0 0.0
        %652 = vmatprep.subr.mxu0 0.0
        %653 = vmatpush1.msra.mxu0 0.0
        %654 = vmatprep.subr.mxu0 0.0
        %655 = vmatpush1.msra.mxu0 0.0
        %656 = vmatprep.subr.mxu0 0.0
        %657 = vmatpush1.msra.mxu0 0.0
        %658 = vmatprep.subr.mxu0 0.0
        %659 = vmatpush1.msra.mxu0 0.0
        %660 = vmatprep.subr.mxu0 0.0
        %661 = vmatpush1.msra.mxu0 0.0
        %662 = vmatprep.subr.mxu0 0.0
        %663 = vmatpush1.msra.mxu0 0.0
        %664 = vmatprep.subr.mxu0 0.0
        %665 = vmatpush1.msra.mxu0 0.0
        %666 = vmatprep.subr.mxu0 0.0
        %667 = vmatpush1.msra.mxu0 0.0
        %668 = vmatprep.subr.mxu0 0.0
        %669 = vmatpush1.msra.mxu0 0.0
        %670 = vmatprep.subr.mxu0 0.0
        %671 = vmatpush1.msra.mxu0 0.0
        %672 = vmatprep.subr.mxu0 0.0
        %673 = vmatpush1.msra.mxu0 0.0
        %674 = vmatprep.subr.mxu0 0.0
        %675 = vmatpush1.msra.mxu0 0.0
        %676 = vmatprep.subr.mxu0 0.0
        %677 = vmatpush1.msra.mxu0 0.0
        %678 = vmatprep.subr.mxu0 0.0
        %679 = vmatpush1.msra.mxu0 0.0
        %680 = vmatprep.subr.mxu0 0.0
        %681 = vmatpush1.msra.mxu0 0.0
        %682 = vmatprep.subr.mxu0 0.0
        %683 = vmatpush1.msra.mxu0 0.0
        %684 = vmatprep.subr.mxu0 0.0
        %685 = vmatpush1.msra.mxu0 0.0
        %686 = vmatprep.subr.mxu0 0.0
        %687 = vmatpush1.msra.mxu0 0.0
        %688 = vmatprep.subr.mxu0 0.0
        %689 = vmatpush1.msra.mxu0 0.0
        %690 = vmatprep.subr.mxu0 0.0
        %691 = vmatpush1.msra.mxu0 0.0
        %692 = vmatprep.subr.mxu0 0.0
        %693 = vmatpush1.msra.mxu0 0.0
        %694 = vmatprep.subr.mxu0 0.0
        %695 = vmatpush1.msra.mxu0 0.0
        %696 = vmatprep.subr.mxu0 0.0
        %697 = vmatpush1.msra.mxu0 0.0
        %698 = vmatprep.subr.mxu0 0.0
        %699 = vmatpush1.msra.mxu0 0.0
        %700 = vmatprep.subr.mxu0 0.0
        %701 = vmatpush1.msra.mxu0 0.0
        %702 = vmatprep.subr.mxu0 0.0
        %703 = vmatpush1.msra.mxu0 0.0
        %704 = vmatprep.mubr.f32.mxu0 0.0
        %705 = vmatmul.mubr.f32.gmra.mrb[0].mxu0 %v638
        %v706 = vpop.f32.mrb[0].mxu0
        %v707 = vadd.f32 0.0, %v706
        %v708 = vpop.f32.mrb[0].mxu0
        %709 = vdwg.mxu0
        %710 = vrot.lane.b32.xlu0 %v267, 64
        %v711 = vpop.permute.xlu0 %710
        %v714 = vsel %vm589, %v631, 0
        %716 = vmatprep.subr.mxu0 0.0
        %717 = vmatpush1.msra.mxu0 %v711
        %718 = vmatprep.subr.mxu0 0.0
        %719 = vmatpush1.msra.mxu0 0.0
        %720 = vmatprep.subr.mxu0 0.0
        %721 = vmatpush1.msra.mxu0 0.0
        %722 = vmatprep.subr.mxu0 0.0
        %723 = vmatpush1.msra.mxu0 0.0
        %724 = vmatprep.subr.mxu0 0.0
        %725 = vmatpush1.msra.mxu0 0.0
        %726 = vmatprep.subr.mxu0 0.0
        %727 = vmatpush1.msra.mxu0 0.0
        %728 = vmatprep.subr.mxu0 0.0
        %729 = vmatpush1.msra.mxu0 0.0
        %730 = vmatprep.subr.mxu0 0.0
        %731 = vmatpush1.msra.mxu0 0.0
        %732 = vmatprep.subr.mxu0 0.0
        %733 = vmatpush1.msra.mxu0 0.0
        %734 = vmatprep.subr.mxu0 0.0
        %735 = vmatpush1.msra.mxu0 0.0
        %736 = vmatprep.subr.mxu0 0.0
        %737 = vmatpush1.msra.mxu0 0.0
        %738 = vmatprep.subr.mxu0 0.0
        %739 = vmatpush1.msra.mxu0 0.0
        %740 = vmatprep.subr.mxu0 0.0
        %741 = vmatpush1.msra.mxu0 0.0
        %742 = vmatprep.subr.mxu0 0.0
        %743 = vmatpush1.msra.mxu0 0.0
        %744 = vmatprep.subr.mxu0 0.0
        %745 = vmatpush1.msra.mxu0 0.0
        %746 = vmatprep.subr.mxu0 0.0
        %747 = vmatpush1.msra.mxu0 0.0
        %748 = vmatprep.subr.mxu0 0.0
        %749 = vmatpush1.msra.mxu0 0.0
        %750 = vmatprep.subr.mxu0 0.0
        %751 = vmatpush1.msra.mxu0 0.0
        %752 = vmatprep.subr.mxu0 0.0
        %753 = vmatpush1.msra.mxu0 0.0
        %754 = vmatprep.subr.mxu0 0.0
        %755 = vmatpush1.msra.mxu0 0.0
        %756 = vmatprep.subr.mxu0 0.0
        %757 = vmatpush1.msra.mxu0 0.0
        %758 = vmatprep.subr.mxu0 0.0
        %759 = vmatpush1.msra.mxu0 0.0
        %760 = vmatprep.subr.mxu0 0.0
        %761 = vmatpush1.msra.mxu0 0.0
        %762 = vmatprep.subr.mxu0 0.0
        %763 = vmatpush1.msra.mxu0 0.0
        %764 = vmatprep.subr.mxu0 0.0
        %765 = vmatpush1.msra.mxu0 0.0
        %766 = vmatprep.subr.mxu0 0.0
        %767 = vmatpush1.msra.mxu0 0.0
        %768 = vmatprep.subr.mxu0 0.0
        %769 = vmatpush1.msra.mxu0 0.0
        %770 = vmatprep.subr.mxu0 0.0
        %771 = vmatpush1.msra.mxu0 0.0
        %772 = vmatprep.subr.mxu0 0.0
        %773 = vmatpush1.msra.mxu0 0.0
        %774 = vmatprep.subr.mxu0 0.0
        %775 = vmatpush1.msra.mxu0 0.0
        %776 = vmatprep.subr.mxu0 0.0
        %777 = vmatpush1.msra.mxu0 0.0
        %778 = vmatprep.subr.mxu0 0.0
        %779 = vmatpush1.msra.mxu0 0.0
        %780 = vmatprep.mubr.f32.mxu0 0.0
        %781 = vmatmul.mubr.f32.gmra.mrb[0].mxu0 %v714
        %v782 = vpop.f32.mrb[0].mxu0
        %v783 = vadd.f32 0.0, %v782
        %v784 = vpop.f32.mrb[0].mxu0
        %785 = vdwg.mxu0
        %786 = vrot.lane.b32.xlu0 %v272, 64
        %v787 = vpop.permute.xlu0 %786
        %v790 = vsel %vm589, %v632, 0
        %792 = vmatprep.subr.mxu0 0.0
        %793 = vmatpush1.msra.mxu0 %v787
        %794 = vmatprep.subr.mxu0 0.0
        %795 = vmatpush1.msra.mxu0 0.0
        %796 = vmatprep.subr.mxu0 0.0
        %797 = vmatpush1.msra.mxu0 0.0
        %798 = vmatprep.subr.mxu0 0.0
        %799 = vmatpush1.msra.mxu0 0.0
        %800 = vmatprep.subr.mxu0 0.0
        %801 = vmatpush1.msra.mxu0 0.0
        %802 = vmatprep.subr.mxu0 0.0
        %803 = vmatpush1.msra.mxu0 0.0
        %804 = vmatprep.subr.mxu0 0.0
        %805 = vmatpush1.msra.mxu0 0.0
        %806 = vmatprep.subr.mxu0 0.0
        %807 = vmatpush1.msra.mxu0 0.0
        %808 = vmatprep.subr.mxu0 0.0
        %809 = vmatpush1.msra.mxu0 0.0
        %810 = vmatprep.subr.mxu0 0.0
        %811 = vmatpush1.msra.mxu0 0.0
        %812 = vmatprep.subr.mxu0 0.0
        %813 = vmatpush1.msra.mxu0 0.0
        %814 = vmatprep.subr.mxu0 0.0
        %815 = vmatpush1.msra.mxu0 0.0
        %816 = vmatprep.subr.mxu0 0.0
        %817 = vmatpush1.msra.mxu0 0.0
        %818 = vmatprep.subr.mxu0 0.0
        %819 = vmatpush1.msra.mxu0 0.0
        %820 = vmatprep.subr.mxu0 0.0
        %821 = vmatpush1.msra.mxu0 0.0
        %822 = vmatprep.subr.mxu0 0.0
        %823 = vmatpush1.msra.mxu0 0.0
        %824 = vmatprep.subr.mxu0 0.0
        %825 = vmatpush1.msra.mxu0 0.0
        %826 = vmatprep.subr.mxu0 0.0
        %827 = vmatpush1.msra.mxu0 0.0
        %828 = vmatprep.subr.mxu0 0.0
        %829 = vmatpush1.msra.mxu0 0.0
        %830 = vmatprep.subr.mxu0 0.0
        %831 = vmatpush1.msra.mxu0 0.0
        %832 = vmatprep.subr.mxu0 0.0
        %833 = vmatpush1.msra.mxu0 0.0
        %834 = vmatprep.subr.mxu0 0.0
        %835 = vmatpush1.msra.mxu0 0.0
        %836 = vmatprep.subr.mxu0 0.0
        %837 = vmatpush1.msra.mxu0 0.0
        %838 = vmatprep.subr.mxu0 0.0
        %839 = vmatpush1.msra.mxu0 0.0
        %840 = vmatprep.subr.mxu0 0.0
        %841 = vmatpush1.msra.mxu0 0.0
        %842 = vmatprep.subr.mxu0 0.0
        %843 = vmatpush1.msra.mxu0 0.0
        %844 = vmatprep.subr.mxu0 0.0
        %845 = vmatpush1.msra.mxu0 0.0
        %846 = vmatprep.subr.mxu0 0.0
        %847 = vmatpush1.msra.mxu0 0.0
        %848 = vmatprep.subr.mxu0 0.0
        %849 = vmatpush1.msra.mxu0 0.0
        %850 = vmatprep.subr.mxu0 0.0
        %851 = vmatpush1.msra.mxu0 0.0
        %852 = vmatprep.subr.mxu0 0.0
        %853 = vmatpush1.msra.mxu0 0.0
        %854 = vmatprep.subr.mxu0 0.0
        %855 = vmatpush1.msra.mxu0 0.0
        %856 = vmatprep.mubr.f32.mxu0 0.0
        %857 = vmatmul.mubr.f32.gmra.mrb[0].mxu0 %v790
        %v858 = vpop.f32.mrb[0].mxu0
        %v859 = vadd.f32 0.0, %v858
        %v860 = vpop.f32.mrb[0].mxu0
        %861 = vdwg.mxu0
        %862 = vrot.lane.b32.xlu0 %v277, 64
        %v863 = vpop.permute.xlu0 %862
        %v866 = vsel %vm589, %v633, 0
        %868 = vmatprep.subr.mxu0 0.0
        %869 = vmatpush1.msra.mxu0 %v863
        %870 = vmatprep.subr.mxu0 0.0
        %871 = vmatpush1.msra.mxu0 0.0
        %872 = vmatprep.subr.mxu0 0.0
        %873 = vmatpush1.msra.mxu0 0.0
        %874 = vmatprep.subr.mxu0 0.0
        %875 = vmatpush1.msra.mxu0 0.0
        %876 = vmatprep.subr.mxu0 0.0
        %877 = vmatpush1.msra.mxu0 0.0
        %878 = vmatprep.subr.mxu0 0.0
        %879 = vmatpush1.msra.mxu0 0.0
        %880 = vmatprep.subr.mxu0 0.0
        %881 = vmatpush1.msra.mxu0 0.0
        %882 = vmatprep.subr.mxu0 0.0
        %883 = vmatpush1.msra.mxu0 0.0
        %884 = vmatprep.subr.mxu0 0.0
        %885 = vmatpush1.msra.mxu0 0.0
        %886 = vmatprep.subr.mxu0 0.0
        %887 = vmatpush1.msra.mxu0 0.0
        %888 = vmatprep.subr.mxu0 0.0
        %889 = vmatpush1.msra.mxu0 0.0
        %890 = vmatprep.subr.mxu0 0.0
        %891 = vmatpush1.msra.mxu0 0.0
        %892 = vmatprep.subr.mxu0 0.0
        %893 = vmatpush1.msra.mxu0 0.0
        %894 = vmatprep.subr.mxu0 0.0
        %895 = vmatpush1.msra.mxu0 0.0
        %896 = vmatprep.subr.mxu0 0.0
        %897 = vmatpush1.msra.mxu0 0.0
        %898 = vmatprep.subr.mxu0 0.0
        %899 = vmatpush1.msra.mxu0 0.0
        %900 = vmatprep.subr.mxu0 0.0
        %901 = vmatpush1.msra.mxu0 0.0
        %902 = vmatprep.subr.mxu0 0.0
        %903 = vmatpush1.msra.mxu0 0.0
        %904 = vmatprep.subr.mxu0 0.0
        %905 = vmatpush1.msra.mxu0 0.0
        %906 = vmatprep.subr.mxu0 0.0
        %907 = vmatpush1.msra.mxu0 0.0
        %908 = vmatprep.subr.mxu0 0.0
        %909 = vmatpush1.msra.mxu0 0.0
        %910 = vmatprep.subr.mxu0 0.0
        %911 = vmatpush1.msra.mxu0 0.0
        %912 = vmatprep.subr.mxu0 0.0
        %913 = vmatpush1.msra.mxu0 0.0
        %914 = vmatprep.subr.mxu0 0.0
        %915 = vmatpush1.msra.mxu0 0.0
        %916 = vmatprep.subr.mxu0 0.0
        %917 = vmatpush1.msra.mxu0 0.0
        %918 = vmatprep.subr.mxu0 0.0
        %919 = vmatpush1.msra.mxu0 0.0
        %920 = vmatprep.subr.mxu0 0.0
        %921 = vmatpush1.msra.mxu0 0.0
        %922 = vmatprep.subr.mxu0 0.0
        %923 = vmatpush1.msra.mxu0 0.0
        %924 = vmatprep.subr.mxu0 0.0
        %925 = vmatpush1.msra.mxu0 0.0
        %926 = vmatprep.subr.mxu0 0.0
        %927 = vmatpush1.msra.mxu0 0.0
        %928 = vmatprep.subr.mxu0 0.0
        %929 = vmatpush1.msra.mxu0 0.0
        %930 = vmatprep.subr.mxu0 0.0
        %931 = vmatpush1.msra.mxu0 0.0
        %932 = vmatprep.mubr.f32.mxu0 0.0
        %933 = vmatmul.mubr.f32.gmra.mrb[0].mxu0 %v866
        %v934 = vpop.f32.mrb[0].mxu0
        %v935 = vadd.f32 0.0, %v934
        %v936 = vpop.f32.mrb[0].mxu0
        %937 = vdwg.mxu0
        %939 = vrot.lane.b32.xlu0 %v783, 32
        %v940 = vpop.permute.xlu0 %939
        %943 = vrot.lane.b32.xlu0 %v859, 64
        %v944 = vpop.permute.xlu0 %943
        %947 = vrot.lane.b32.xlu0 %v935, 96
        %v948 = vpop.permute.xlu0 %947
        %v950 = vsel %vm283, %v707, %v940
        %vm951 = vcmask 523264
        %v952 = vsel %vm951, %v950, %v944
        %vm953 = vcmask 785408
        %v954 = vsel %vm953, %v952, %v948
        %955 = vst [vmem:[%s163] sm:$0xff] %v954
        %s956 = sand.u32 %s93, 1
        %s957 = scalar_lea.sflag [#allocation3], %s956
        %s958 = sand.u32 %s93, 1
        %s959 = smul.addr %s958, 8
        %s960 = scalar_lea.vmem [#allocation2], %s959
        // Predicated region
        $region33: #{tpu_custom_call.1} parent=31 // pred_check
          %p961 = pneg %p103
        $region34: #{tpu_custom_call.1} parent=31 // pred_check_branch
          %963 = sbr.rel (%p961) target = $region36
        $region35: #{tpu_custom_call.1} parent=31 // pred_region
          %s965 = ssub.s32 128, 128
          %966 = vsyncadd %s957, %s965
          %s967 = smul.addr %s17, 128
          %s968 = scalar_lea.hbm %s3, %s967
          %s970 = sshll.u32 %s960, 4
          %s971 = int_to_ptr.vmem [resolvable:$true] %s970
          %973 = dma.vmem_to_hbm [thread:$0]  %s971, 128, %s968, %s957
        $region36: #{tpu_custom_call.1} parent=31 // pred_fallthru
          _
      $region32: #{tpu_custom_call.1} parent=5 // pred_fallthru
        _
      %p974 = scmp.le.s32.totalorder 2, %s12
      // Predicated region
      $region37: #{tpu_custom_call.1} parent=5 // pred_check
        %p975 = pneg %p974
      $region38: #{tpu_custom_call.1} parent=5 // pred_check_branch
        %977 = sbr.rel (%p975) target = $region40
      $region39: #{tpu_custom_call.1} parent=5 // pred_region
        %s978 = ssub.s32 %s12, 2
        // Predicated region
        $region41: #{tpu_custom_call.1} parent=39 // pred_check
          %p979 = pneg %p109
        $region42: #{tpu_custom_call.1} parent=39 // pred_check_branch
          %981 = sbr.rel (%p979) target = $region44
        $region43: #{tpu_custom_call.1} parent=39 // pred_region
          %s982 = sand.u32 %s94, 1
          %s983 = scalar_lea.sflag [#allocation3], %s982
          %s984 = sand.u32 %s94, 1
          %s985 = smul.addr %s984, 8
          %s986 = scalar_lea.vmem [#allocation2], %s985
          %987 = dma.done %s983, 128
        $region44: #{tpu_custom_call.1} parent=39 // pred_fallthru
          _
      $region40: #{tpu_custom_call.1} parent=5 // pred_fallthru
        _
    $region6: #{tpu_custom_call.1} parent=1 // loop_footer
      %s16 = sadd.s32 1, %s12
    $region7: #{tpu_custom_call.1} parent=1 // loop_footer_branch
      %11 = sbr.rel target = $region3
    $region8: #{tpu_custom_call.1} parent=1 // loop_exit
      _
    %988 = vsyncpa [#allocation3], 1
    %s989 = scalar_lea.sflag [#allocation3], 1
    %990 = vsyncpa %s989, 1

</llo_original>
